<compile_context>
chip_gen: v6e
topology: v6e:2x2x1
jax: 0.10.0
libtpu: 0.0.40
codegen_flags: <defaults>
</compile_context>

<pallas_src>
import jax
import jax.numpy as jnp
from jax.experimental import pallas as pl
from jax.experimental.pallas import tpu as pltpu


_SMALL_BYTES_THRESHOLD = 1 << 20          # < 1 MiB total input -> plain jnp.sum
_MAX_LANE_TILE = 2048                     # feature-tile cap (multiple of 128)
_MAX_SUBLANE_TILE = 512                   # batch-tile cap (multiple of 8)


def _reduce_state_kernel(h_ref, c_ref, h_out_ref, c_out_ref):
    # Blocks are (D, tb, th); the sum over the leading axis lowers to D-1
    # vector adds per vreg (no cross-lane XLU work), then one lane-dense
    # store each.  Accumulate in f32 so bf16/f16 inputs don't lose precision.
    h_out_ref[...] = jnp.sum(
        h_ref[...], axis=0, keepdims=True, dtype=jnp.float32
    ).astype(h_out_ref.dtype)
    c_out_ref[...] = jnp.sum(
        c_ref[...], axis=0, keepdims=True, dtype=jnp.float32
    ).astype(c_out_ref.dtype)


def _vmem_budget_bytes():
    """Per-generation scoped-VMEM budget (conservative fallback: v7x 64 MiB)."""
    try:
        cap = pltpu.get_tpu_info().vmem_capacity_bytes
    except Exception:
        cap = 64 * 1024 * 1024
    # Use at most half of physical VMEM, never more than 64 MiB.
    return int(min(cap // 2, 64 * 1024 * 1024))


def _pick_tiles(D, B, H, itemsize, budget):
    """Largest (8,128)-aligned tiles whose pipeline footprint fits the budget."""
    th = min(H, _MAX_LANE_TILE) if H % 128 == 0 else H
    tb = min(B, _MAX_SUBLANE_TILE) if B % 8 == 0 else B

    # Pipeline footprint ~= 2 bufs x (2 inputs x D*tb*th + 2 outputs x tb*th).
    def footprint(tb_, th_):
        return 2 * (2 * D * tb_ * th_ + 2 * tb_ * th_) * itemsize

    target = int(budget * 0.75)  # headroom for other scratch
    while footprint(tb, th) > target and th >= 256 and th % 256 == 0:
        th //= 2
    while footprint(tb, th) > target and tb >= 16 and tb % 16 == 0:
        tb //= 2
    return tb, th


def reduce_state(h, c, *, force_pallas=False):
    """(h, c), each (D, B, H) -> (sum over dim 0, keepdim), each (1, B, H)."""
    assert h.shape == c.shape and h.ndim == 3 and h.dtype == c.dtype
    D, B, H = h.shape
    itemsize = jnp.dtype(h.dtype).itemsize
    total_in_bytes = 2 * D * B * H * itemsize

    if not force_pallas and total_in_bytes < _SMALL_BYTES_THRESHOLD:
        # For actual PGN sizes the whole cost is fixed overhead; let XLA fuse.
        # TODO(synk): fuse this D-sum as a prologue of the downstream
        # Linear+ReLU matmul Pallas kernel to hide the h/c DMA behind MXU work.
        return (jnp.sum(h, axis=0, keepdims=True, dtype=jnp.float32).astype(h.dtype),
                jnp.sum(c, axis=0, keepdims=True, dtype=jnp.float32).astype(c.dtype))

    # ---- lane-dense layout plumbing (free wrapper-side reshape) ------------
    Bp, Hp = B, H
    reshaped = False
    if H % 128 != 0:
        plane = B * H
        if plane % 128 == 0:
            lane = 128
            for cand in range(min(_MAX_LANE_TILE, plane), 127, -128):
                if plane % cand == 0:
                    lane = cand
                    break
            Bp, Hp = plane // lane, lane
            reshaped = True
        # else: small/odd shape -> full-extent blocks (masked stores), still
        # correct; only reachable via force_pallas on tiny inputs.

    h_in = h.reshape(D, Bp, Hp) if reshaped else h
    c_in = c.reshape(D, Bp, Hp) if reshaped else c

    # ---- VMEM-budget-derived tiles -----------------------------------------
    budget = _vmem_budget_bytes()
    tb, th = _pick_tiles(D, Bp, Hp, itemsize, budget)

    # ---- v7x: make sure both TensorCores get work on large inputs ----------
    grid_b, grid_h = pl.cdiv(Bp, tb), pl.cdiv(Hp, th)
    block_in_bytes = 2 * D * tb * th * itemsize
    if grid_b * grid_h == 1 and block_in_bytes >= (1 << 20):
        if th >= 256 and th % 256 == 0:
            th //= 2
        elif tb >= 16 and tb % 16 == 0:
            tb //= 2
        grid_b, grid_h = pl.cdiv(Bp, tb), pl.cdiv(Hp, th)
    grid = (grid_b, grid_h)

    in_spec = pl.BlockSpec((D, tb, th), lambda i, j: (0, i, j))
    out_spec = pl.BlockSpec((1, tb, th), lambda i, j: (0, i, j))

    cost = pl.CostEstimate(
        flops=2 * (D - 1) * B * H,
        transcendentals=0,
        bytes_accessed=2 * (D * B * H + B * H) * itemsize,
    )

    h_red, c_red = pl.pallas_call(
        _reduce_state_kernel,
        out_shape=(jax.ShapeDtypeStruct((1, Bp, Hp), h.dtype),
                   jax.ShapeDtypeStruct((1, Bp, Hp), c.dtype)),
        grid=grid,
        in_specs=[in_spec, in_spec],
        out_specs=(out_spec, out_spec),
        compiler_params=pltpu.CompilerParams(
            dimension_semantics=("parallel", "parallel"),
            vmem_limit_bytes=budget),
        cost_estimate=cost,
    )(h_in, c_in)

    if reshaped:
        h_red = h_red.reshape(1, B, H)
        c_red = c_red.reshape(1, B, H)
    return h_red, c_red


def _check(h, c, *, force_pallas=False, atol=1e-5, rtol=1e-5):
    h_red, c_red = reduce_state(h, c, force_pallas=force_pallas)
    jax.block_until_ready((h_red, c_red))
    ref_h = jnp.sum(h.astype(jnp.float32), axis=0, keepdims=True).astype(h.dtype)
    ref_c = jnp.sum(c.astype(jnp.float32), axis=0, keepdims=True).astype(c.dtype)
    assert h_red.shape == (1,) + h.shape[1:]
    assert c_red.shape == (1,) + c.shape[1:]
    assert bool(jnp.allclose(h_red.astype(jnp.float32), ref_h.astype(jnp.float32),
                             atol=atol, rtol=rtol))
    assert bool(jnp.allclose(c_red.astype(jnp.float32), ref_c.astype(jnp.float32),
                             atol=atol, rtol=rtol))


if __name__ == "__main__":
    key = jax.random.PRNGKey(0)
    keys = jax.random.split(key, 12)

    # hidden of a 1-layer bidirectional LSTM: (num_directions=2, batch, hidden)

    # Primary (lane/sublane-dense) demo shape — Pallas path forced on.
    h = jax.random.normal(keys[0], (2, 8, 128), dtype=jnp.float32)
    c = jax.random.normal(keys[1], (2, 8, 128), dtype=jnp.float32)
    _check(h, c, force_pallas=True)

    # Tiny PGN-config shape: auto-dispatch (jnp.sum fallback) AND forced
    # Pallas (full-dim blocks, grid (1,1)).
    h_s = jax.random.normal(keys[2], (2, 2, 16), dtype=jnp.float32)
    c_s = jax.random.normal(keys[3], (2, 2, 16), dtype=jnp.float32)
    _check(h_s, c_s)                      # fallback path
    _check(h_s, c_s, force_pallas=True)   # kernel path

    # H not a multiple of 128 but B*H is -> lane-dense reshape path.
    h_r = jax.random.normal(keys[4], (2, 32, 96), dtype=jnp.float32)
    c_r = jax.random.normal(keys[5], (2, 32, 96), dtype=jnp.float32)
    _check(h_r, c_r, force_pallas=True)

    # bf16 inputs -> f32 in-kernel accumulation.
    h_b = jax.random.normal(keys[6], (4, 16, 256), dtype=jnp.bfloat16)
    c_b = jax.random.normal(keys[7], (4, 16, 256), dtype=jnp.bfloat16)
    _check(h_b, c_b, force_pallas=True, atol=1e-2, rtol=1e-2)

    # Larger shape: clears the small-input threshold, exercises the tiled
    # multi-step grid (>=2 steps so both v7x TensorCores get work).
    h_big = jax.random.normal(keys[8], (2, 64, 4096), dtype=jnp.float32)
    c_big = jax.random.normal(keys[9], (2, 64, 4096), dtype=jnp.float32)
    _check(h_big, c_big)

    print("KERNEL_OK")
</pallas_src>

<mosaic_0001>
module attributes {stable_mosaic.version = 11 : i64} {
  func.func @_reduce_state_kernel(%arg0: i32, %arg1: i32, %arg2: memref<2x8x128xf32, #tpu.memory_space<vmem>>, %arg3: memref<2x8x128xf32, #tpu.memory_space<vmem>>, %arg4: memref<1x8x128xf32, #tpu.memory_space<vmem>>, %arg5: memref<1x8x128xf32, #tpu.memory_space<vmem>>) attributes {dimension_semantics = [#tpu.dimension_semantics<parallel>, #tpu.dimension_semantics<parallel>], iteration_bounds = array<i64: 1, 1>, scalar_prefetch = 0 : i64, scratch_operands = 0 : i64, tpu.core_type = #tpu.core_type<tc>, window_params = [{transform_indices = @transform_0, window_bounds = array<i64: 2, 8, 128>}, {transform_indices = @transform_1, window_bounds = array<i64: 2, 8, 128>}, {transform_indices = @transform_2, window_bounds = array<i64: 1, 8, 128>}, {transform_indices = @transform_3, window_bounds = array<i64: 1, 8, 128>}]} {
    %c0 = arith.constant 0 : index
    %c0_0 = arith.constant 0 : index
    %c0_1 = arith.constant 0 : index
    %0 = vector.load %arg2[%c0, %c0_0, %c0_1] : memref<2x8x128xf32, #tpu.memory_space<vmem>>, vector<2x8x128xf32>
    %cst = arith.constant dense<0.000000e+00> : vector<8x128xf32>
    %1 = vector.multi_reduction <add>, %0, %cst [0] : vector<2x8x128xf32> to vector<8x128xf32>
    %2 = vector.shape_cast %1 : vector<8x128xf32> to vector<1x8x128xf32>
    %c0_2 = arith.constant 0 : index
    %c0_3 = arith.constant 0 : index
    %c0_4 = arith.constant 0 : index
    %3 = vector.load %arg4[%c0_2, %c0_3, %c0_4] : memref<1x8x128xf32, #tpu.memory_space<vmem>>, vector<1x8x128xf32>
    tpu.vector_store %arg4[%c0_2, %c0_3, %c0_4], %2 {strides = array<i32>} : memref<1x8x128xf32, #tpu.memory_space<vmem>>, vector<1x8x128xf32>,
    %c0_5 = arith.constant 0 : index
    %c0_6 = arith.constant 0 : index
    %c0_7 = arith.constant 0 : index
    %4 = vector.load %arg3[%c0_5, %c0_6, %c0_7] : memref<2x8x128xf32, #tpu.memory_space<vmem>>, vector<2x8x128xf32>
    %cst_8 = arith.constant dense<0.000000e+00> : vector<8x128xf32>
    %5 = vector.multi_reduction <add>, %4, %cst_8 [0] : vector<2x8x128xf32> to vector<8x128xf32>
    %6 = vector.shape_cast %5 : vector<8x128xf32> to vector<1x8x128xf32>
    %c0_9 = arith.constant 0 : index
    %c0_10 = arith.constant 0 : index
    %c0_11 = arith.constant 0 : index
    %7 = vector.load %arg5[%c0_9, %c0_10, %c0_11] : memref<1x8x128xf32, #tpu.memory_space<vmem>>, vector<1x8x128xf32>
    tpu.vector_store %arg5[%c0_9, %c0_10, %c0_11], %6 {strides = array<i32>} : memref<1x8x128xf32, #tpu.memory_space<vmem>>, vector<1x8x128xf32>,
    return
  }
  func.func @transform_0(%arg0: i32, %arg1: i32) -> (i32, i32, i32) {
    %c0_i32 = arith.constant 0 : i32
    %c0_i32_0 = arith.constant 0 : i32
    return %c0_i32, %arg0, %arg1 : i32, i32, i32
  }
  func.func @transform_1(%arg0: i32, %arg1: i32) -> (i32, i32, i32) {
    %c0_i32 = arith.constant 0 : i32
    %c0_i32_0 = arith.constant 0 : i32
    return %c0_i32, %arg0, %arg1 : i32, i32, i32
  }
  func.func @transform_2(%arg0: i32, %arg1: i32) -> (i32, i32, i32) {
    %c0_i32 = arith.constant 0 : i32
    %c0_i32_0 = arith.constant 0 : i32
    return %c0_i32, %arg0, %arg1 : i32, i32, i32
  }
  func.func @transform_3(%arg0: i32, %arg1: i32) -> (i32, i32, i32) {
    %c0_i32 = arith.constant 0 : i32
    %c0_i32_0 = arith.constant 0 : i32
    return %c0_i32, %arg0, %arg1 : i32, i32, i32
  }
}

</mosaic_0001>

<llo_original>
// kernel: tpu_custom_call.1
$region0: #{tpu_custom_call.1}
  #allocation0 [shape = 'u32[]', space=smem, size = 0x4, offset = 0x4, fixed_abs, tag = 'smem constant byte address 0x4 - core index']
  #allocation1 [shape = 'u32[144,128]{1,0:T(1,128)}', space=vmem, size = 0x12000, scoped, tag = 'internal scratch']
  %s0 = inlined_call_operand.hbm [shape: f32[2,8,128], index: 0, kind: input, shape index: {}]
  %s1 = inlined_call_operand.hbm [shape: f32[2,8,128], index: 1, kind: input, shape index: {}]
  %s2 = inlined_call_operand.hbm [shape: f32[1,8,128], index: 2, kind: output, shape index: {0}]
  %s3 = inlined_call_operand.hbm [shape: f32[1,8,128], index: 3, kind: output, shape index: {1}]
  %4 = xla_tuple %s2, %s3
  %s5 = sld [smem:[#allocation0]]
  $region34: #{tpu_custom_call.1} parent=0
    _
  %s7 = ssub.s32 1, %s5
  %s8 = scalar_select 0, %s7, %s5
  $region1: #{tpu_custom_call.1} parent=0
    #allocation2 [shape = 'u8[8192]{0}', space=vmem, size = 0x2000, scoped, tag = 'input window, operand 0, single buffered']
    #allocation3 [shape = 's32[1]{0}', space=sflag, size = 0x4, scoped, tag = 'scoped memory for tpu_custom_call.1']
    #allocation4 [shape = 's32[1]{0}', space=sflag, size = 0x4, scoped, tag = 'scoped memory for tpu_custom_call.1']
    #allocation5 [shape = 'u8[8192]{0}', space=vmem, size = 0x2000, scoped, tag = 'input window, operand 1, single buffered']
    #allocation6 [shape = 's32[1]{0}', space=sflag, size = 0x4, scoped, tag = 'scoped memory for tpu_custom_call.1']
    #allocation7 [shape = 'u8[4096]{0}', space=vmem, size = 0x1000, scoped, tag = 'output window, operand 0, single buffered']
    #allocation8 [shape = 'u8[4096]{0}', space=vmem, size = 0x1000, scoped, tag = 'output window, operand 1, single buffered']
    #allocation9 [shape = 's32[1]{0}', space=sflag, size = 0x4, scoped, tag = 'scoped memory for tpu_custom_call.1']
    %9 = vsyncpa [#allocation3], 0
    %10 = vsyncpa [#allocation6], 0
    %11 = vsyncpa [#allocation4], 0
    %12 = vsyncpa [#allocation9], 0
    // Predicated region
    $region2: #{tpu_custom_call.1} parent=1 // pred_check
      _
    $region3: #{tpu_custom_call.1} parent=1 // pred_check_branch
      %14 = sbr.rel (0) target = $region5
    $region4: #{tpu_custom_call.1} parent=1 // pred_region
      %s16 = ssub.s32 256, 256
      %17 = vsyncadd [#allocation3], %s16
      %s18 = sshll.u32 [#allocation2], 4
      %s19 = int_to_ptr.vmem [resolvable:$true] %s18
      %24 = dma.hbm_to_vmem [thread:$0]  %s0, 256, %s19, [#allocation3], 128, 128, 8
    $region5: #{tpu_custom_call.1} parent=1 // pred_fallthru
      _
    // Predicated region
    $region6: #{tpu_custom_call.1} parent=1 // pred_check
      _
    $region7: #{tpu_custom_call.1} parent=1 // pred_check_branch
      %26 = sbr.rel (0) target = $region9
    $region8: #{tpu_custom_call.1} parent=1 // pred_region
      %s28 = ssub.s32 256, 256
      %29 = vsyncadd [#allocation6], %s28
      %s30 = sshll.u32 [#allocation5], 4
      %s31 = int_to_ptr.vmem [resolvable:$true] %s30
      %36 = dma.hbm_to_vmem [thread:$0]  %s1, 256, %s31, [#allocation6], 128, 128, 8
    $region9: #{tpu_custom_call.1} parent=1 // pred_fallthru
      _
    // Predicated region
    $region10: #{tpu_custom_call.1} parent=1 // pred_check
      _
    $region11: #{tpu_custom_call.1} parent=1 // pred_check_branch
      %38 = sbr.rel (0) target = $region13
    $region12: #{tpu_custom_call.1} parent=1 // pred_region
      %39 = dma.done [#allocation3], 256
    $region13: #{tpu_custom_call.1} parent=1 // pred_fallthru
      _
    // Predicated region
    $region14: #{tpu_custom_call.1} parent=1 // pred_check
      _
    $region15: #{tpu_custom_call.1} parent=1 // pred_check_branch
      %41 = sbr.rel (0) target = $region17
    $region16: #{tpu_custom_call.1} parent=1 // pred_region
      %42 = dma.done [#allocation6], 256
    $region17: #{tpu_custom_call.1} parent=1 // pred_fallthru
      _
    %v43 = vld [vmem:[#allocation2] sm:$0xff]
    %v44 = vld [vmem:[#allocation2 + $0x8] sm:$0xff]
    %v45 = vadd.f32 %v43, %v44
    %46 = vst [vmem:[#allocation7] sm:$0xff] %v45
    %v47 = vld [vmem:[#allocation5] sm:$0xff]
    %v48 = vld [vmem:[#allocation5 + $0x8] sm:$0xff]
    %v49 = vadd.f32 %v47, %v48
    %50 = vst [vmem:[#allocation8] sm:$0xff] %v49
    // Predicated region
    $region18: #{tpu_custom_call.1} parent=1 // pred_check
      _
    $region19: #{tpu_custom_call.1} parent=1 // pred_check_branch
      %52 = sbr.rel (0) target = $region21
    $region20: #{tpu_custom_call.1} parent=1 // pred_region
      %s54 = ssub.s32 128, 128
      %55 = vsyncadd [#allocation4], %s54
      %s57 = sshll.u32 [#allocation7], 4
      %s58 = int_to_ptr.vmem [resolvable:$true] %s57
      %60 = dma.vmem_to_hbm [thread:$0]  %s58, 128, %s2, [#allocation4]
    $region21: #{tpu_custom_call.1} parent=1 // pred_fallthru
      _
    // Predicated region
    $region22: #{tpu_custom_call.1} parent=1 // pred_check
      _
    $region23: #{tpu_custom_call.1} parent=1 // pred_check_branch
      %62 = sbr.rel (0) target = $region25
    $region24: #{tpu_custom_call.1} parent=1 // pred_region
      %s64 = ssub.s32 128, 128
      %65 = vsyncadd [#allocation9], %s64
      %s67 = sshll.u32 [#allocation8], 4
      %s68 = int_to_ptr.vmem [resolvable:$true] %s67
      %70 = dma.vmem_to_hbm [thread:$0]  %s68, 128, %s3, [#allocation9]
    $region25: #{tpu_custom_call.1} parent=1 // pred_fallthru
      _
    // Predicated region
    $region26: #{tpu_custom_call.1} parent=1 // pred_check
      _
    $region27: #{tpu_custom_call.1} parent=1 // pred_check_branch
      %72 = sbr.rel (0) target = $region29
    $region28: #{tpu_custom_call.1} parent=1 // pred_region
      %73 = dma.done [#allocation4], 128
    $region29: #{tpu_custom_call.1} parent=1 // pred_fallthru
      _
    // Predicated region
    $region30: #{tpu_custom_call.1} parent=1 // pred_check
      _
    $region31: #{tpu_custom_call.1} parent=1 // pred_check_branch
      %75 = sbr.rel (0) target = $region33
    $region32: #{tpu_custom_call.1} parent=1 // pred_region
      %76 = dma.done [#allocation9], 128
    $region33: #{tpu_custom_call.1} parent=1 // pred_fallthru
      _
    %77 = vsyncpa [#allocation3], 1
    %78 = vsyncpa [#allocation6], 1
    %79 = vsyncpa [#allocation4], 1
    %80 = vsyncpa [#allocation9], 1

</llo_original>
